<compile_context>
chip_gen: v6e
topology: v6e:2x2x1
jax: 0.10.0
libtpu: 0.0.40
codegen_flags: <defaults>
</compile_context>

<pallas_src>
import functools

import jax
import jax.numpy as jnp
from jax.experimental import pallas as pl
from jax.experimental.pallas import tpu as pltpu

LANE = 128                       # lanes per vreg (last dim)
SUBL = 8                         # f32 sublanes per vreg (accumulator shape)
SUB_ROWS = 1024                  # inner sub-tile rows (multiple of 32)
BYTE_BUDGET_PER_BUF = 4 << 20    # per-input, per-pipeline-buffer VMEM budget


def _cdiv(a, b):
    return (a + b - 1) // b


def _round_up(x, m):
    return ((x + m - 1) // m) * m


def _sublane_multiple(dtype):
    size = jnp.dtype(dtype).itemsize
    if size >= 4:
        return 8
    if size == 2:
        return 16
    return 32


def _num_core_splits():
    """2 on chips whose Pallas core spans two TensorCores (v4/v5p/v7x), else 1."""
    try:
        kind = jax.devices()[0].device_kind.lower()
    except Exception:
        return 1
    if ("v7" in kind) or ("v5p" in kind) or ("v4" in kind):
        return 2
    return 1


def _dice_kernel(pred_ref, tgt_ref, out_ref, acc_pt, acc_p, acc_t, *,
                 rows_valid, block_rows, sub_rows, blocks_per_core,
                 may_mask, approx_sigmoid):
    c = pl.program_id(0)       # core-split axis ("parallel")
    j = pl.program_id(1)       # streaming axis ("arbitrary", reduction)

    @pl.when(j == 0)
    def _init():
        acc_pt[...] = jnp.zeros_like(acc_pt)
        acc_p[...] = jnp.zeros_like(acc_p)
        acc_t[...] = jnp.zeros_like(acc_t)

    n_sub = block_rows // sub_rows
    g = c * blocks_per_core + j          # unclamped global block index
    blk_row0 = g * block_rows            # first global row of this block

    def sigmoid(x):
        if approx_sigmoid:
            # EUP approx reciprocal; ~1e-3 relative error on the scalar loss.
            return pl.reciprocal(1.0 + jnp.exp(-x), approx=True)
        return jax.nn.sigmoid(x)

    def sub_step(i, masked):
        if isinstance(i, int):
            off = i * sub_rows
        else:
            off = pl.multiple_of(i * sub_rows, sub_rows)
        p = sigmoid(pred_ref[pl.ds(off, sub_rows), :].astype(jnp.float32))
        t = tgt_ref[pl.ds(off, sub_rows), :].astype(jnp.float32)
        if masked:
            # Row-level mask (no element-index int32 overflow).  Must stay on
            # for every block whose coverage extends past rows_valid — the
            # overhang / duplicate-block region is unspecified data.
            row = (jax.lax.broadcasted_iota(jnp.int32, (sub_rows, LANE), 0)
                   + blk_row0 + off)
            valid = row < rows_valid
            p = jnp.where(valid, p, 0.0)
            t = jnp.where(valid, t, 0.0)
        k = sub_rows // SUBL
        # VPU-only accumulation into (8,128) vreg-shaped scratch.
        acc_pt[...] += (p * t).reshape(k, SUBL, LANE).sum(axis=0)
        acc_p[...] += p.reshape(k, SUBL, LANE).sum(axis=0)
        acc_t[...] += t.reshape(k, SUBL, LANE).sum(axis=0)

    def run(masked):
        if n_sub == 1:
            sub_step(0, masked)
        else:
            def body(i, carry):
                sub_step(i, masked)
                return carry
            jax.lax.fori_loop(0, n_sub, body, 0, unroll=(n_sub <= 8))

    if may_mask:
        # Only blocks that can contain invalid rows (last real block and the
        # clamped duplicate blocks from the core split) pay for the mask.
        overhangs = (g + 1) * block_rows > rows_valid

        @pl.when(overhangs)
        def _():
            run(True)

        @pl.when(jnp.logical_not(overhangs))
        def _():
            run(False)
    else:
        run(False)

    @pl.when(j == pl.num_programs(1) - 1)
    def _finalize():
        out_ref[0, 0] = acc_pt[...]   # sum(sigmoid(pred) * target), per-lane
        out_ref[0, 1] = acc_p[...]    # sum(sigmoid(pred)), per-lane
        out_ref[0, 2] = acc_t[...]    # sum(target), per-lane


def dice_loss(pred, target, smooth=1.0, *, approx_sigmoid=False, num_splits=None):
    """Pallas TPU implementation of DiceLoss.forward (returns scalar f32)."""
    assert pred.shape == target.shape, (pred.shape, target.shape)
    n = int(pred.size)
    if n == 0:
        return jnp.float32(0.0)

    p_flat = pred.reshape(-1)
    t_flat = target.reshape(-1)

    rows = n // LANE
    n_main = rows * LANE

    # Ragged tail (< 128 elements): tiny jnp reduction instead of jnp.pad
    # copies of the full inputs.
    if n_main < n:
        p_tail = jax.nn.sigmoid(p_flat[n_main:].astype(jnp.float32))
        t_tail = t_flat[n_main:].astype(jnp.float32)
        tail = jnp.stack(
            [jnp.sum(p_tail * t_tail), jnp.sum(p_tail), jnp.sum(t_tail)])
    else:
        tail = jnp.zeros((3,), jnp.float32)

    if rows == 0:
        totals = tail
    else:
        p2 = (p_flat if n_main == n else p_flat[:n_main]).reshape(rows, LANE)
        t2 = (t_flat if n_main == n else t_flat[:n_main]).reshape(rows, LANE)

        splits = _num_core_splits() if num_splits is None else int(num_splits)

        sub_align = max(_sublane_multiple(pred.dtype),
                        _sublane_multiple(target.dtype))
        max_item = max(jnp.dtype(pred.dtype).itemsize,
                       jnp.dtype(target.dtype).itemsize)
        rows_budget = max(
            SUB_ROWS,
            (BYTE_BUDGET_PER_BUF // (LANE * max_item)) // SUB_ROWS * SUB_ROWS)

        if rows >= rows_budget:
            block_rows = rows_budget
            sub_rows = SUB_ROWS
        else:
            block_rows = _round_up(rows, sub_align)
            sub_rows = min(SUB_ROWS, block_rows)
            block_rows = _round_up(block_rows, sub_rows)

        num_blocks = _cdiv(rows, block_rows)
        if num_blocks < splits:
            splits = 1                      # avoid duplicate-block waste
        blocks_per_core = _cdiv(num_blocks, splits)

        # Compile the mask out entirely when the grid tiles `rows` exactly.
        may_mask = (splits * blocks_per_core * block_rows) != rows

        def in_index_map(c, j):
            # Clamp so duplicate / overshoot blocks never DMA past the array;
            # the in-kernel mask (from the UNclamped index) zeroes them.
            g = jnp.minimum(c * blocks_per_core + j, num_blocks - 1)
            return (g, 0)

        kernel = functools.partial(
            _dice_kernel,
            rows_valid=rows,
            block_rows=block_rows,
            sub_rows=sub_rows,
            blocks_per_core=blocks_per_core,
            may_mask=may_mask,
            approx_sigmoid=approx_sigmoid,
        )

        in_bytes_per_buf = block_rows * LANE * (
            jnp.dtype(pred.dtype).itemsize + jnp.dtype(target.dtype).itemsize)
        # Double-buffered inputs + sub-tile temporaries + accumulators; raise
        # above v5e's 16 MiB scoped default, stay far under v7x's 64 MiB.
        vmem_limit = int(min(48 << 20,
                             max(12 << 20, 2 * in_bytes_per_buf + (8 << 20))))

        partials = pl.pallas_call(
            kernel,
            out_shape=jax.ShapeDtypeStruct((splits, 3, SUBL, LANE),
                                           jnp.float32),
            grid_spec=pltpu.PrefetchScalarGridSpec(
                num_scalar_prefetch=0,
                grid=(splits, blocks_per_core),
                in_specs=[
                    pl.BlockSpec((block_rows, LANE), in_index_map),
                    pl.BlockSpec((block_rows, LANE), in_index_map),
                ],
                out_specs=pl.BlockSpec((1, 3, SUBL, LANE),
                                       lambda c, j: (c, 0, 0, 0)),
                scratch_shapes=[
                    pltpu.VMEM((SUBL, LANE), jnp.float32),
                    pltpu.VMEM((SUBL, LANE), jnp.float32),
                    pltpu.VMEM((SUBL, LANE), jnp.float32),
                ],
            ),
            # TODO(synk): on v7x, confirm in the profile that the leading axis
            # really core-shards; if not, switch it to pltpu.CORE_PARALLEL
            # (keeping per-core accumulators and init/finalize as-is).
            compiler_params=pltpu.CompilerParams(
                dimension_semantics=("parallel", "arbitrary"),
                vmem_limit_bytes=vmem_limit,
            ),
        )(p2, t2)

        totals = jnp.sum(partials, axis=(0, 2, 3)) + tail

    intersection = totals[0]
    pred_sum = totals[1]
    tgt_sum = totals[2]
    dice = (2.0 * intersection + float(smooth)) / (pred_sum + tgt_sum + float(smooth))
    return (1.0 - dice).astype(jnp.float32)


def dice_loss_ref(pred, target, smooth=1.0):
    p = jax.nn.sigmoid(pred.astype(jnp.float32)).reshape(-1)
    t = target.astype(jnp.float32).reshape(-1)
    inter = jnp.sum(p * t)
    dice = (2.0 * inter + smooth) / (jnp.sum(p) + jnp.sum(t) + smooth)
    return 1.0 - dice


if __name__ == "__main__":
    key = jax.random.PRNGKey(0)
    k_pred, k_tgt = jax.random.split(key)

    # Small NCHW shapes consistent with a segmentation head: [B, C, H, W]
    B, C, H, W = 2, 4, 16, 16
    pred = jax.random.normal(k_pred, (B, C, H, W), dtype=jnp.float32)
    target = (jax.random.uniform(k_tgt, (B, C, H, W)) > 0.5).astype(jnp.float32)

    # f32, lane-aligned case.
    loss = jax.block_until_ready(dice_loss(pred, target, smooth=1.0))
    ref = jax.block_until_ready(dice_loss_ref(pred, target, smooth=1.0))
    assert jnp.allclose(loss, ref, atol=1e-5, rtol=1e-5), (loss, ref)

    # bf16 inputs (half the HBM bytes; kernel upcasts internally).
    pred_bf = pred.astype(jnp.bfloat16)
    tgt_bf = target.astype(jnp.bfloat16)
    loss_bf = jax.block_until_ready(dice_loss(pred_bf, tgt_bf, smooth=1.0))
    ref_bf = jax.block_until_ready(dice_loss_ref(pred_bf, tgt_bf, smooth=1.0))
    assert jnp.allclose(loss_bf, ref_bf, atol=1e-5, rtol=1e-5), (loss_bf, ref_bf)

    # Ragged size (numel not a multiple of 128): kernel handles the 128-aligned
    # prefix, wrapper adds the small tail.
    pr = jax.random.normal(k_pred, (2, 3, 13, 17), dtype=jnp.float32)
    tr = (jax.random.uniform(k_tgt, (2, 3, 13, 17)) > 0.5).astype(jnp.float32)
    loss_r = jax.block_until_ready(dice_loss(pr, tr, smooth=1.0))
    ref_r = jax.block_until_ready(dice_loss_ref(pr, tr, smooth=1.0))
    assert jnp.allclose(loss_r, ref_r, atol=1e-5, rtol=1e-5), (loss_r, ref_r)

    # Tiny input (< 128 elements) exercising the pure-JAX fallback path.
    pt = jax.random.normal(k_pred, (3, 5), dtype=jnp.float32)
    tt = (jax.random.uniform(k_tgt, (3, 5)) > 0.5).astype(jnp.float32)
    loss_t = jax.block_until_ready(dice_loss(pt, tt, smooth=1.0))
    ref_t = jax.block_until_ready(dice_loss_ref(pt, tt, smooth=1.0))
    assert jnp.allclose(loss_t, ref_t, atol=1e-5, rtol=1e-5), (loss_t, ref_t)

    print("KERNEL_OK")
</pallas_src>

<mosaic_0001>
module attributes {stable_mosaic.version = 11 : i64} {
  func.func @_dice_kernel(%arg0: i32, %arg1: i32, %arg2: memref<16x128xf32, #tpu.memory_space<vmem>>, %arg3: memref<16x128xf32, #tpu.memory_space<vmem>>, %arg4: memref<1x3x8x128xf32, #tpu.memory_space<vmem>>, %arg5: memref<8x128xf32, #tpu.memory_space<vmem>>, %arg6: memref<8x128xf32, #tpu.memory_space<vmem>>, %arg7: memref<8x128xf32, #tpu.memory_space<vmem>>) attributes {dimension_semantics = [#tpu.dimension_semantics<parallel>, #tpu.dimension_semantics<arbitrary>], iteration_bounds = array<i64: 1, 1>, scalar_prefetch = 0 : i64, scratch_operands = 3 : i64, tpu.core_type = #tpu.core_type<tc>, window_params = [{transform_indices = @transform_0, window_bounds = array<i64: 16, 128>}, {transform_indices = @transform_1, window_bounds = array<i64: 16, 128>}, {transform_indices = @transform_2, window_bounds = array<i64: 1, 3, 8, 128>}]} {
    %c0_i32 = arith.constant 0 : i32
    %0 = arith.cmpi eq, %arg1, %c0_i32 : i32
    %1 = arith.extui %0 : i1 to i32
    %c0_i32_0 = arith.constant 0 : i32
    %2 = arith.cmpi ne, %1, %c0_i32_0 : i32
    scf.if %2 {
      %cst_21 = arith.constant 0.000000e+00 : f32
      %29 = vector.broadcast %cst_21 : f32 to vector<8x128xf32>
      %c0_22 = arith.constant 0 : index
      %c0_23 = arith.constant 0 : index
      %30 = vector.load %arg5[%c0_22, %c0_23] : memref<8x128xf32, #tpu.memory_space<vmem>>, vector<8x128xf32>
      tpu.vector_store %arg5[%c0_22, %c0_23], %29 {strides = array<i32>} : memref<8x128xf32, #tpu.memory_space<vmem>>, vector<8x128xf32>,
      %cst_24 = arith.constant 0.000000e+00 : f32
      %31 = vector.broadcast %cst_24 : f32 to vector<8x128xf32>
      %c0_25 = arith.constant 0 : index
      %c0_26 = arith.constant 0 : index
      %32 = vector.load %arg6[%c0_25, %c0_26] : memref<8x128xf32, #tpu.memory_space<vmem>>, vector<8x128xf32>
      tpu.vector_store %arg6[%c0_25, %c0_26], %31 {strides = array<i32>} : memref<8x128xf32, #tpu.memory_space<vmem>>, vector<8x128xf32>,
      %cst_27 = arith.constant 0.000000e+00 : f32
      %33 = vector.broadcast %cst_27 : f32 to vector<8x128xf32>
      %c0_28 = arith.constant 0 : index
      %c0_29 = arith.constant 0 : index
      %34 = vector.load %arg7[%c0_28, %c0_29] : memref<8x128xf32, #tpu.memory_space<vmem>>, vector<8x128xf32>
      tpu.vector_store %arg7[%c0_28, %c0_29], %33 {strides = array<i32>} : memref<8x128xf32, #tpu.memory_space<vmem>>, vector<8x128xf32>,
    } else {
    }
    %c0 = arith.constant 0 : index
    %c0_1 = arith.constant 0 : index
    %3 = vector.load %arg2[%c0, %c0_1] : memref<16x128xf32, #tpu.memory_space<vmem>>, vector<16x128xf32>
    %4 = arith.negf %3 : vector<16x128xf32>
    %5 = math.exp %4 : vector<16x128xf32>
    %cst = arith.constant 1.000000e+00 : f32
    %6 = vector.broadcast %cst : f32 to vector<16x128xf32>
    %7 = arith.addf %6, %5 : vector<16x128xf32>
    %8 = arith.divf %6, %7 : vector<16x128xf32>
    %c0_2 = arith.constant 0 : index
    %c0_3 = arith.constant 0 : index
    %9 = vector.load %arg3[%c0_2, %c0_3] : memref<16x128xf32, #tpu.memory_space<vmem>>, vector<16x128xf32>
    %c0_4 = arith.constant 0 : index
    %c0_5 = arith.constant 0 : index
    %10 = vector.load %arg5[%c0_4, %c0_5] : memref<8x128xf32, #tpu.memory_space<vmem>>, vector<8x128xf32>
    %11 = arith.mulf %8, %9 : vector<16x128xf32>
    %12 = vector.shape_cast %11 : vector<16x128xf32> to vector<2x8x128xf32>
    %cst_6 = arith.constant dense<0.000000e+00> : vector<8x128xf32>
    %13 = vector.multi_reduction <add>, %12, %cst_6 [0] : vector<2x8x128xf32> to vector<8x128xf32>
    %14 = arith.addf %10, %13 : vector<8x128xf32>
    %c0_7 = arith.constant 0 : index
    %c0_8 = arith.constant 0 : index
    %15 = vector.load %arg5[%c0_7, %c0_8] : memref<8x128xf32, #tpu.memory_space<vmem>>, vector<8x128xf32>
    tpu.vector_store %arg5[%c0_7, %c0_8], %14 {strides = array<i32>} : memref<8x128xf32, #tpu.memory_space<vmem>>, vector<8x128xf32>,
    %c0_9 = arith.constant 0 : index
    %c0_10 = arith.constant 0 : index
    %16 = vector.load %arg6[%c0_9, %c0_10] : memref<8x128xf32, #tpu.memory_space<vmem>>, vector<8x128xf32>
    %17 = vector.shape_cast %8 : vector<16x128xf32> to vector<2x8x128xf32>
    %cst_11 = arith.constant dense<0.000000e+00> : vector<8x128xf32>
    %18 = vector.multi_reduction <add>, %17, %cst_11 [0] : vector<2x8x128xf32> to vector<8x128xf32>
    %19 = arith.addf %16, %18 : vector<8x128xf32>
    %c0_12 = arith.constant 0 : index
    %c0_13 = arith.constant 0 : index
    %20 = vector.load %arg6[%c0_12, %c0_13] : memref<8x128xf32, #tpu.memory_space<vmem>>, vector<8x128xf32>
    tpu.vector_store %arg6[%c0_12, %c0_13], %19 {strides = array<i32>} : memref<8x128xf32, #tpu.memory_space<vmem>>, vector<8x128xf32>,
    %c0_14 = arith.constant 0 : index
    %c0_15 = arith.constant 0 : index
    %21 = vector.load %arg7[%c0_14, %c0_15] : memref<8x128xf32, #tpu.memory_space<vmem>>, vector<8x128xf32>
    %22 = vector.shape_cast %9 : vector<16x128xf32> to vector<2x8x128xf32>
    %cst_16 = arith.constant dense<0.000000e+00> : vector<8x128xf32>
    %23 = vector.multi_reduction <add>, %22, %cst_16 [0] : vector<2x8x128xf32> to vector<8x128xf32>
    %24 = arith.addf %21, %23 : vector<8x128xf32>
    %c0_17 = arith.constant 0 : index
    %c0_18 = arith.constant 0 : index
    %25 = vector.load %arg7[%c0_17, %c0_18] : memref<8x128xf32, #tpu.memory_space<vmem>>, vector<8x128xf32>
    tpu.vector_store %arg7[%c0_17, %c0_18], %24 {strides = array<i32>} : memref<8x128xf32, #tpu.memory_space<vmem>>, vector<8x128xf32>,
    %c0_i32_19 = arith.constant 0 : i32
    %26 = arith.cmpi eq, %arg1, %c0_i32_19 : i32
    %27 = arith.extui %26 : i1 to i32
    %c0_i32_20 = arith.constant 0 : i32
    %28 = arith.cmpi ne, %27, %c0_i32_20 : i32
    scf.if %28 {
      %c0_21 = arith.constant 0 : index
      %c0_22 = arith.constant 0 : index
      %29 = vector.load %arg5[%c0_21, %c0_22] : memref<8x128xf32, #tpu.memory_space<vmem>>, vector<8x128xf32>
      %c0_23 = arith.constant 0 : index
      %c0_24 = arith.constant 0 : index
      %c0_25 = arith.constant 0 : index
      %c0_26 = arith.constant 0 : index
      %30 = vector.load %arg4[%c0_23, %c0_24, %c0_25, %c0_26] : memref<1x3x8x128xf32, #tpu.memory_space<vmem>>, vector<1x1x8x128xf32>
      %31 = vector.shape_cast %30 : vector<1x1x8x128xf32> to vector<8x128xf32>
      %32 = vector.shape_cast %29 : vector<8x128xf32> to vector<1x1x8x128xf32>
      tpu.vector_store %arg4[%c0_23, %c0_24, %c0_25, %c0_26], %32 {strides = array<i32>} : memref<1x3x8x128xf32, #tpu.memory_space<vmem>>, vector<1x1x8x128xf32>,
      %c0_27 = arith.constant 0 : index
      %c0_28 = arith.constant 0 : index
      %33 = vector.load %arg6[%c0_27, %c0_28] : memref<8x128xf32, #tpu.memory_space<vmem>>, vector<8x128xf32>
      %c0_29 = arith.constant 0 : index
      %c1 = arith.constant 1 : index
      %c0_30 = arith.constant 0 : index
      %c0_31 = arith.constant 0 : index
      %34 = vector.load %arg4[%c0_29, %c1, %c0_30, %c0_31] : memref<1x3x8x128xf32, #tpu.memory_space<vmem>>, vector<1x1x8x128xf32>
      %35 = vector.shape_cast %34 : vector<1x1x8x128xf32> to vector<8x128xf32>
      %36 = vector.shape_cast %33 : vector<8x128xf32> to vector<1x1x8x128xf32>
      tpu.vector_store %arg4[%c0_29, %c1, %c0_30, %c0_31], %36 {strides = array<i32>} : memref<1x3x8x128xf32, #tpu.memory_space<vmem>>, vector<1x1x8x128xf32>,
      %c0_32 = arith.constant 0 : index
      %c0_33 = arith.constant 0 : index
      %37 = vector.load %arg7[%c0_32, %c0_33] : memref<8x128xf32, #tpu.memory_space<vmem>>, vector<8x128xf32>
      %c0_34 = arith.constant 0 : index
      %c2 = arith.constant 2 : index
      %c0_35 = arith.constant 0 : index
      %c0_36 = arith.constant 0 : index
      %38 = vector.load %arg4[%c0_34, %c2, %c0_35, %c0_36] : memref<1x3x8x128xf32, #tpu.memory_space<vmem>>, vector<1x1x8x128xf32>
      %39 = vector.shape_cast %38 : vector<1x1x8x128xf32> to vector<8x128xf32>
      %40 = vector.shape_cast %37 : vector<8x128xf32> to vector<1x1x8x128xf32>
      tpu.vector_store %arg4[%c0_34, %c2, %c0_35, %c0_36], %40 {strides = array<i32>} : memref<1x3x8x128xf32, #tpu.memory_space<vmem>>, vector<1x1x8x128xf32>,
    } else {
    }
    return
  }
  func.func @transform_0(%arg0: i32, %arg1: i32) -> (i32, i32) {
    %c1_i32 = arith.constant 1 : i32
    %0 = arith.muli %arg0, %c1_i32 : i32
    %1 = arith.addi %0, %arg1 : i32
    %c0_i32 = arith.constant 0 : i32
    %2 = arith.minsi %1, %c0_i32 : i32
    %c0_i32_0 = arith.constant 0 : i32
    %c0_i32_1 = arith.constant 0 : i32
    return %2, %c0_i32_0 : i32, i32
  }
  func.func @transform_1(%arg0: i32, %arg1: i32) -> (i32, i32) {
    %c1_i32 = arith.constant 1 : i32
    %0 = arith.muli %arg0, %c1_i32 : i32
    %1 = arith.addi %0, %arg1 : i32
    %c0_i32 = arith.constant 0 : i32
    %2 = arith.minsi %1, %c0_i32 : i32
    %c0_i32_0 = arith.constant 0 : i32
    %c0_i32_1 = arith.constant 0 : i32
    return %2, %c0_i32_0 : i32, i32
  }
  func.func @transform_2(%arg0: i32, %arg1: i32) -> (i32, i32, i32, i32) {
    %c0_i32 = arith.constant 0 : i32
    %c0_i32_0 = arith.constant 0 : i32
    %c0_i32_1 = arith.constant 0 : i32
    %c0_i32_2 = arith.constant 0 : i32
    return %arg0, %c0_i32, %c0_i32_0, %c0_i32_1 : i32, i32, i32, i32
  }
}

</mosaic_0001>

<llo_original>
// kernel: tpu_custom_call.1
$region0: #{tpu_custom_call.1}
  #allocation0 [shape = 'u32[]', space=smem, size = 0x4, offset = 0x4, fixed_abs, tag = 'smem constant byte address 0x4 - core index']
  #allocation1 [shape = 'u32[144,128]{1,0:T(1,128)}', space=vmem, size = 0x12000, scoped, tag = 'internal scratch']
  #allocation2 [shape = 'f32[8,128]{1,0:T(8,128)}', space=vmem, size = 0x1000, scoped, tag = 'scratch operand']
  #allocation3 [shape = 'f32[8,128]{1,0:T(8,128)}', space=vmem, size = 0x1000, scoped, tag = 'scratch operand']
  #allocation4 [shape = 'f32[8,128]{1,0:T(8,128)}', space=vmem, size = 0x1000, scoped, tag = 'scratch operand']
  %s0 = inlined_call_operand.hbm [shape: f32[16,128], index: 0, kind: input, shape index: {}]
  %s1 = inlined_call_operand.hbm [shape: f32[16,128], index: 1, kind: input, shape index: {}]
  %s2 = inlined_call_operand.hbm [shape: f32[1,3,8,128], index: 2, kind: output, shape index: {}]
  %s3 = sld [smem:[#allocation0]]
  $region34: #{tpu_custom_call.1} parent=0
    _
  %s5 = ssub.s32 1, %s3
  %s6 = scalar_select 0, %s5, %s3
  $region1: #{tpu_custom_call.1} parent=0
    #allocation5 [shape = 'u8[8192]{0}', space=vmem, size = 0x2000, scoped, tag = 'input window, operand 0, single buffered']
    #allocation6 [shape = 's32[1]{0}', space=sflag, size = 0x4, scoped, tag = 'scoped memory for tpu_custom_call.1']
    #allocation7 [shape = 's32[1]{0}', space=sflag, size = 0x4, scoped, tag = 'scoped memory for tpu_custom_call.1']
    #allocation8 [shape = 'u8[8192]{0}', space=vmem, size = 0x2000, scoped, tag = 'input window, operand 1, single buffered']
    #allocation9 [shape = 's32[1]{0}', space=sflag, size = 0x4, scoped, tag = 'scoped memory for tpu_custom_call.1']
    #allocation10 [shape = 'u8[12288]{0}', space=vmem, size = 0x3000, scoped, tag = 'output window, operand 0, single buffered']
    %7 = vsyncpa [#allocation6], 0
    %8 = vsyncpa [#allocation9], 0
    %9 = vsyncpa [#allocation7], 0
    // Predicated region
    $region2: #{tpu_custom_call.1} parent=1 // pred_check
      _
    $region3: #{tpu_custom_call.1} parent=1 // pred_check_branch
      %11 = sbr.rel (0) target = $region5
    $region4: #{tpu_custom_call.1} parent=1 // pred_region
      %s12 = sadd.s32 0, 0
      %p13 = scmp.lt.s32.totalorder %s12, 0
      %s14 = scalar_select %p13, %s12, 0
      %s15 = smul.u32 2, %s14
      %s17 = ssub.s32 256, 256
      %18 = vsyncadd [#allocation6], %s17
      %s19 = smul.addr %s15, 128
      %s20 = scalar_lea.hbm %s0, %s19
      %s21 = sshll.u32 [#allocation5], 4
      %s22 = int_to_ptr.vmem [resolvable:$true] %s21
      %27 = dma.hbm_to_vmem [thread:$0]  %s20, 256, %s22, [#allocation6], 128, 128, 8
    $region5: #{tpu_custom_call.1} parent=1 // pred_fallthru
      _
    // Predicated region
    $region6: #{tpu_custom_call.1} parent=1 // pred_check
      _
    $region7: #{tpu_custom_call.1} parent=1 // pred_check_branch
      %29 = sbr.rel (0) target = $region9
    $region8: #{tpu_custom_call.1} parent=1 // pred_region
      %s30 = sadd.s32 0, 0
      %p31 = scmp.lt.s32.totalorder %s30, 0
      %s32 = scalar_select %p31, %s30, 0
      %s33 = smul.u32 2, %s32
      %s35 = ssub.s32 256, 256
      %36 = vsyncadd [#allocation9], %s35
      %s37 = smul.addr %s33, 128
      %s38 = scalar_lea.hbm %s1, %s37
      %s39 = sshll.u32 [#allocation8], 4
      %s40 = int_to_ptr.vmem [resolvable:$true] %s39
      %45 = dma.hbm_to_vmem [thread:$0]  %s38, 256, %s40, [#allocation9], 128, 128, 8
    $region9: #{tpu_custom_call.1} parent=1 // pred_fallthru
      _
    // Predicated region
    $region10: #{tpu_custom_call.1} parent=1 // pred_check
      _
    $region11: #{tpu_custom_call.1} parent=1 // pred_check_branch
      %47 = sbr.rel (0) target = $region13
    $region12: #{tpu_custom_call.1} parent=1 // pred_region
      %48 = dma.done [#allocation6], 256
    $region13: #{tpu_custom_call.1} parent=1 // pred_fallthru
      _
    // Predicated region
    $region14: #{tpu_custom_call.1} parent=1 // pred_check
      _
    $region15: #{tpu_custom_call.1} parent=1 // pred_check_branch
      %50 = sbr.rel (0) target = $region17
    $region16: #{tpu_custom_call.1} parent=1 // pred_region
      %51 = dma.done [#allocation9], 256
    $region17: #{tpu_custom_call.1} parent=1 // pred_fallthru
      _
    %s52 = sadd.s32 0, 0
    %p53 = scmp.lt.s32.totalorder %s52, 0
    %s54 = scalar_select %p53, %s52, 0
    %s55 = smul.u32 2, %s54
    %s56 = sadd.s32 0, 0
    %p57 = scmp.lt.s32.totalorder %s56, 0
    %s58 = scalar_select %p57, %s56, 0
    %s59 = smul.u32 2, %s58
    %p60 = scmp.eq.s32.totalorder 0, 0
    // Predicated region
    $region18: #{tpu_custom_call.1} parent=1 // pred_check
      %p61 = pneg %p60
    $region19: #{tpu_custom_call.1} parent=1 // pred_check_branch
      %63 = sbr.rel (%p61) target = $region21
    $region20: #{tpu_custom_call.1} parent=1 // pred_region
      %64 = vst [vmem:[#allocation2] sm:$0xff] 0.0
      %65 = vst [vmem:[#allocation3] sm:$0xff] 0.0
      %66 = vst [vmem:[#allocation4] sm:$0xff] 0.0
    $region21: #{tpu_custom_call.1} parent=1 // pred_fallthru
      _
    %v67 = vld [vmem:[#allocation5] sm:$0xff]
    %v68 = vld [vmem:[#allocation5 + $0x8] sm:$0xff]
    %v69 = vxor.u32 %v67, 2147483648
    %v70 = vxor.u32 %v68, 2147483648
    %v71 = vmul.f32 %v69, 1.442695
    %v72 = vpow.pop %v71
    %v73 = vmul.f32 %v70, 1.442695
    %v74 = vpow.pop %v73
    %v75 = vadd.f32 %v72, 1.0
    %v76 = vadd.f32 %v74, 1.0
    %v77 = vrcp.pop %v75
    %v78 = vmul.f32 1.0, %v77
    %v79 = vrcp.pop %v76
    %v80 = vmul.f32 1.0, %v79
    %v81 = vld [vmem:[#allocation8] sm:$0xff]
    %v82 = vld [vmem:[#allocation8 + $0x8] sm:$0xff]
    %v83 = vld [vmem:[#allocation2] sm:$0xff]
    %v84 = vmul.f32 %v78, %v81
    %v85 = vmul.f32 %v80, %v82
    %v86 = vadd.f32 %v84, %v85
    %v87 = vadd.f32 %v83, %v86
    %88 = vst [vmem:[#allocation2] sm:$0xff] %v87
    %v89 = vld [vmem:[#allocation3] sm:$0xff]
    %v90 = vadd.f32 %v78, %v80
    %v91 = vadd.f32 %v89, %v90
    %92 = vst [vmem:[#allocation3] sm:$0xff] %v91
    %v93 = vld [vmem:[#allocation4] sm:$0xff]
    %v94 = vadd.f32 %v81, %v82
    %v95 = vadd.f32 %v93, %v94
    %96 = vst [vmem:[#allocation4] sm:$0xff] %v95
    // Predicated region
    $region22: #{tpu_custom_call.1} parent=1 // pred_check
      %p97 = pneg %p60
    $region23: #{tpu_custom_call.1} parent=1 // pred_check_branch
      %99 = sbr.rel (%p97) target = $region25
    $region24: #{tpu_custom_call.1} parent=1 // pred_region
      %v100 = vld [vmem:[#allocation2] sm:$0xff]
      %101 = vst [vmem:[#allocation10] sm:$0xff] %v100
      %v102 = vld [vmem:[#allocation3] sm:$0xff]
      %s103 = scalar_lea.vmem [#allocation10], 8
      %104 = vst [vmem:[%s103] sm:$0xff] %v102
      %v105 = vld [vmem:[#allocation4] sm:$0xff]
      %s106 = scalar_lea.vmem [#allocation10], 16
      %107 = vst [vmem:[%s106] sm:$0xff] %v105
    $region25: #{tpu_custom_call.1} parent=1 // pred_fallthru
      _
    // Predicated region
    $region26: #{tpu_custom_call.1} parent=1 // pred_check
      _
    $region27: #{tpu_custom_call.1} parent=1 // pred_check_branch
      %109 = sbr.rel (0) target = $region29
    $region28: #{tpu_custom_call.1} parent=1 // pred_region
      %s111 = ssub.s32 384, 384
      %112 = vsyncadd [#allocation7], %s111
      %s113 = sshll.u32 [#allocation10], 4
      %s114 = int_to_ptr.vmem [resolvable:$true] %s113
      %119 = dma.vmem_to_hbm [thread:$0]  %s114, 384, %s2, [#allocation7], 128, 128, 8
    $region29: #{tpu_custom_call.1} parent=1 // pred_fallthru
      _
    // Predicated region
    $region30: #{tpu_custom_call.1} parent=1 // pred_check
      _
    $region31: #{tpu_custom_call.1} parent=1 // pred_check_branch
      %121 = sbr.rel (0) target = $region33
    $region32: #{tpu_custom_call.1} parent=1 // pred_region
      %122 = dma.done [#allocation7], 384
    $region33: #{tpu_custom_call.1} parent=1 // pred_fallthru
      _
    %123 = vsyncpa [#allocation6], 1
    %124 = vsyncpa [#allocation9], 1
    %125 = vsyncpa [#allocation7], 1

</llo_original>
